<compile_context>
chip_gen: v6e
topology: v6e:2x2x1
jax: 0.10.0
libtpu: 0.0.40
codegen_flags: <defaults>
</compile_context>

<pallas_src>
import functools

import jax
import jax.numpy as jnp
from jax.experimental import pallas as pl
from jax.experimental.pallas import tpu as pltpu

_LANE = 128  # TPU lane width (last-axis vector width)


def _actor_kernel(s_ref, w1_ref, b1_ref, w2_ref, b2_ref, w3_ref, b3_ref, o_ref,
                  *, max_lin_vel, max_ang_vel):
    x = s_ref[...]                                              # (D, TB) batch on lanes

    # Layer 1: (H, D) @ (D, TB) + (H, 1) -> ReLU   (weight-stationary)
    h1 = jnp.dot(w1_ref[...], x, preferred_element_type=jnp.float32) + b1_ref[...]
    h1 = jnp.maximum(h1, 0.0).astype(w2_ref.dtype)   # no-op for f32; keeps bf16 MXU rate

    # Layer 2: (H, H) @ (H, TB) + (H, 1) -> ReLU
    h2 = jnp.dot(w2_ref[...], h1, preferred_element_type=jnp.float32) + b2_ref[...]
    h2 = jnp.maximum(h2, 0.0).astype(w3_ref.dtype)

    # Layer 3: (A, H) @ (H, TB) + (A, 1)
    a = jnp.dot(w3_ref[...], h2, preferred_element_type=jnp.float32) + b3_ref[...]

    # Row-wise output squashing (fused; replaces PyTorch's in-place column writes):
    #   row 0 -> sigmoid * max_lin_vel, row 1 -> tanh * max_ang_vel, rest raw.
    row = jax.lax.broadcasted_iota(jnp.int32, a.shape, dimension=0)
    lin = jax.nn.sigmoid(a) * max_lin_vel
    ang = jnp.tanh(a) * max_ang_vel
    o_ref[...] = jnp.where(row == 0, lin, jnp.where(row == 1, ang, a)).astype(o_ref.dtype)


def _choose_batch_tile(B, batch_tile, *, min_tiles=2):
    """Pick (tile, num_tiles) for the lane/batch grid axis."""
    if B < min_tiles * _LANE:
        # Small batch: a single full-extent block (full array dims are always legal
        # w.r.t. the (8,128) tiling rule).  At this size the kernel is pure launch
        # latency anyway.
        return B, 1
    # Large batch: lane-aligned (128-multiple) tiles, at least `min_tiles` of them
    # so the "parallel" grid axis actually engages both TensorCores on v7x,
    # capped by `batch_tile` (VMEM / pipelining budget: ~0.7 KB VMEM per batch
    # column in this transposed orientation, so 4096 cols ~ 3 MB << 16 MiB v5e).
    tb = min(batch_tile, pl.cdiv(B, min_tiles))
    tb = max(_LANE, (tb // _LANE) * _LANE)
    return tb, pl.cdiv(B, tb)


def actor_forward_t(state_t, params, max_lin_vel, max_ang_vel, *, batch_tile=4096):
    """Transposed-layout entry point: state_t (num_inputs, B) -> action_t (num_actions, B).

    Preferred high-throughput API: batch lives on the lane axis, so input loads and
    output stores are lane-dense and the MXU is driven weight-stationary.
    """
    w1, b1, w2, b2, w3, b3 = params
    D, B = state_t.shape
    H = w1.shape[0]
    A = w3.shape[0]

    tb, nb = _choose_batch_tile(B, batch_tile)

    kernel = functools.partial(
        _actor_kernel,
        max_lin_vel=float(max_lin_vel),
        max_ang_vel=float(max_ang_vel),
    )

    # Constant-index blocks: weights/biases DMA'd once, VMEM-resident across tiles.
    # TODO(synk): pipeline_mode=pl.Buffered(1) would drop their (pointless) double
    # buffer; omitted since the saving is a few KB and not every jax version plumbs
    # pipeline_mode through pallas_call.
    const = lambda shape: pl.BlockSpec(shape, lambda i: (0, 0))

    return pl.pallas_call(
        kernel,
        out_shape=jax.ShapeDtypeStruct((A, B), jnp.float32),
        grid=(nb,),
        in_specs=[
            pl.BlockSpec((D, tb), lambda i: (0, i)),   # state tile: batch on lanes
            const((H, D)), const((H, 1)),              # w1, b1
            const((H, H)), const((H, 1)),              # w2, b2
            const((A, H)), const((A, 1)),              # w3, b3
        ],
        out_specs=pl.BlockSpec((A, tb), lambda i: (0, i)),
        compiler_params=pltpu.CompilerParams(
            # Batch tiles are independent -> shard across both TCs on v7x.
            dimension_semantics=("parallel",),
        ),
    )(state_t, w1, b1, w2, b2, w3, b3)


def actor_forward(state, params, max_lin_vel, max_ang_vel, *, batch_tile=4096):
    """PyTorch-layout convenience wrapper: state (B, num_inputs) -> (B, num_actions).

    High-throughput callers should keep data in the transposed (feature, batch)
    layout end-to-end and call actor_forward_t directly; the transposes here are
    tiny XLA copies kept only for API parity with the nn.Module.
    """
    action_t = actor_forward_t(state.T, params, max_lin_vel, max_ang_vel,
                               batch_tile=batch_tile)
    return action_t.T


def init_actor_params(key, num_inputs, num_actions, hidden_size, dtype=jnp.float32):
    """PyTorch-default nn.Linear init; weights stored (out_features, in_features).

    dtype=jnp.bfloat16 halves the streamed-state / weight DMA on v6e/v7x (MXU takes
    bf16 natively at full rate; accumulation stays f32 in-kernel).  f32 kept as the
    default for a tight correctness check.
    """
    ks = jax.random.split(key, 6)

    def lin(kw, kb, fan_in, fan_out):
        bound = 1.0 / (fan_in ** 0.5)
        w = jax.random.uniform(kw, (fan_out, fan_in), jnp.float32, -bound, bound)
        b = jax.random.uniform(kb, (fan_out, 1), jnp.float32, -bound, bound)
        return w.astype(dtype), b.astype(dtype)

    w1, b1 = lin(ks[0], ks[1], num_inputs, hidden_size)
    w2, b2 = lin(ks[2], ks[3], hidden_size, hidden_size)
    w3, b3 = lin(ks[4], ks[5], hidden_size, num_actions)
    return (w1, b1, w2, b2, w3, b3)


def actor_reference(state, params, max_lin_vel, max_ang_vel):
    """Pure-JAX reference matching the PyTorch forward exactly (standard layout)."""
    w1, b1, w2, b2, w3, b3 = params
    h1 = jnp.maximum(state @ w1.T + b1[:, 0], 0.0)
    h2 = jnp.maximum(h1 @ w2.T + b2[:, 0], 0.0)
    a = h2 @ w3.T + b3[:, 0]
    a = a.at[:, 0].set(jax.nn.sigmoid(a[:, 0]) * max_lin_vel)
    a = a.at[:, 1].set(jnp.tanh(a[:, 1]) * max_ang_vel)
    return a


if __name__ == "__main__":
    key = jax.random.PRNGKey(0)
    k_param, k_state, k_state2 = jax.random.split(key, 3)

    num_inputs = 20      # e.g. laser scan + goal features
    num_actions = 2      # (linear vel, angular vel)
    hidden_size = 32
    max_lin_vel = 0.22
    max_ang_vel = 2.0

    params = init_actor_params(k_param, num_inputs, num_actions, hidden_size)

    # Small batch (single full-extent block path).
    batch = 8
    state = jax.random.normal(k_state, (batch, num_inputs), jnp.float32)
    action = jax.block_until_ready(actor_forward(state, params, max_lin_vel, max_ang_vel))
    ref = actor_reference(state, params, max_lin_vel, max_ang_vel)
    assert action.shape == (batch, num_actions), action.shape
    assert jnp.allclose(action, ref, atol=1e-5, rtol=1e-5), (action, ref)

    # Larger ragged batch (exercises the lane-aligned multi-tile / dual-TC path).
    batch2 = 300
    state2 = jax.random.normal(k_state2, (batch2, num_inputs), jnp.float32)
    action2 = jax.block_until_ready(actor_forward(state2, params, max_lin_vel, max_ang_vel))
    ref2 = actor_reference(state2, params, max_lin_vel, max_ang_vel)
    assert action2.shape == (batch2, num_actions), action2.shape
    assert jnp.allclose(action2, ref2, atol=1e-5, rtol=1e-5)

    print("KERNEL_OK")
</pallas_src>

<mosaic_0001>
module attributes {stable_mosaic.version = 11 : i64} {
  func.func @_actor_kernel(%arg0: i32, %arg1: memref<20x8xf32, #tpu.memory_space<vmem>>, %arg2: memref<32x20xf32, #tpu.memory_space<vmem>>, %arg3: memref<32x1xf32, #tpu.memory_space<vmem>>, %arg4: memref<32x32xf32, #tpu.memory_space<vmem>>, %arg5: memref<32x1xf32, #tpu.memory_space<vmem>>, %arg6: memref<2x32xf32, #tpu.memory_space<vmem>>, %arg7: memref<2x1xf32, #tpu.memory_space<vmem>>, %arg8: memref<2x8xf32, #tpu.memory_space<vmem>>) attributes {dimension_semantics = [#tpu.dimension_semantics<parallel>], iteration_bounds = array<i64: 1>, scalar_prefetch = 0 : i64, scratch_operands = 0 : i64, tpu.core_type = #tpu.core_type<tc>, window_params = [{transform_indices = @transform_0, window_bounds = array<i64: 20, 8>}, {pipeline_mode = #tpu.pipeline_mode<synchronous>, transform_indices = @transform_1, window_bounds = array<i64: 32, 20>}, {pipeline_mode = #tpu.pipeline_mode<synchronous>, transform_indices = @transform_2, window_bounds = array<i64: 32, 1>}, {pipeline_mode = #tpu.pipeline_mode<synchronous>, transform_indices = @transform_3, window_bounds = array<i64: 32, 32>}, {pipeline_mode = #tpu.pipeline_mode<synchronous>, transform_indices = @transform_4, window_bounds = array<i64: 32, 1>}, {pipeline_mode = #tpu.pipeline_mode<synchronous>, transform_indices = @transform_5, window_bounds = array<i64: 2, 32>}, {pipeline_mode = #tpu.pipeline_mode<synchronous>, transform_indices = @transform_6, window_bounds = array<i64: 2, 1>}, {transform_indices = @transform_7, window_bounds = array<i64: 2, 8>}]} {
    %c0 = arith.constant 0 : index
    %c0_0 = arith.constant 0 : index
    %0 = vector.load %arg1[%c0, %c0_0] : memref<20x8xf32, #tpu.memory_space<vmem>>, vector<20x8xf32>
    %c0_1 = arith.constant 0 : index
    %c0_2 = arith.constant 0 : index
    %1 = vector.load %arg2[%c0_1, %c0_2] : memref<32x20xf32, #tpu.memory_space<vmem>>, vector<32x20xf32>
    %cst = arith.constant dense<0.000000e+00> : vector<32x8xf32>
    %2 = tpu.matmul %1, %0, %cst {dimension_numbers = #tpu.dot_dimension_numbers<[1], [0], [0], [1], [0, 0, 1, 1], [], []>} : vector<32x20xf32>, vector<20x8xf32>, vector<32x8xf32> -> vector<32x8xf32>
    %c0_3 = arith.constant 0 : index
    %c0_4 = arith.constant 0 : index
    %3 = vector.load %arg3[%c0_3, %c0_4] : memref<32x1xf32, #tpu.memory_space<vmem>>, vector<32x1xf32>
    %4 = vector.broadcast %3 : vector<32x1xf32> to vector<32x8xf32>
    %5 = arith.addf %2, %4 : vector<32x8xf32>
    %cst_5 = arith.constant 0.000000e+00 : f32
    %6 = vector.broadcast %cst_5 : f32 to vector<32x8xf32>
    %7 = arith.maximumf %5, %6 : vector<32x8xf32>
    %c0_6 = arith.constant 0 : index
    %c0_7 = arith.constant 0 : index
    %8 = vector.load %arg4[%c0_6, %c0_7] : memref<32x32xf32, #tpu.memory_space<vmem>>, vector<32x32xf32>
    %cst_8 = arith.constant dense<0.000000e+00> : vector<32x8xf32>
    %9 = tpu.matmul %8, %7, %cst_8 {dimension_numbers = #tpu.dot_dimension_numbers<[1], [0], [0], [1], [0, 0, 1, 1], [], []>} : vector<32x32xf32>, vector<32x8xf32>, vector<32x8xf32> -> vector<32x8xf32>
    %c0_9 = arith.constant 0 : index
    %c0_10 = arith.constant 0 : index
    %10 = vector.load %arg5[%c0_9, %c0_10] : memref<32x1xf32, #tpu.memory_space<vmem>>, vector<32x1xf32>
    %11 = vector.broadcast %10 : vector<32x1xf32> to vector<32x8xf32>
    %12 = arith.addf %9, %11 : vector<32x8xf32>
    %cst_11 = arith.constant 0.000000e+00 : f32
    %13 = vector.broadcast %cst_11 : f32 to vector<32x8xf32>
    %14 = arith.maximumf %12, %13 : vector<32x8xf32>
    %c0_12 = arith.constant 0 : index
    %c0_13 = arith.constant 0 : index
    %15 = vector.load %arg6[%c0_12, %c0_13] : memref<2x32xf32, #tpu.memory_space<vmem>>, vector<2x32xf32>
    %cst_14 = arith.constant dense<0.000000e+00> : vector<2x8xf32>
    %16 = tpu.matmul %15, %14, %cst_14 {dimension_numbers = #tpu.dot_dimension_numbers<[1], [0], [0], [1], [0, 0, 1, 1], [], []>} : vector<2x32xf32>, vector<32x8xf32>, vector<2x8xf32> -> vector<2x8xf32>
    %c0_15 = arith.constant 0 : index
    %c0_16 = arith.constant 0 : index
    %17 = vector.load %arg7[%c0_15, %c0_16] : memref<2x1xf32, #tpu.memory_space<vmem>>, vector<2x1xf32>
    %18 = vector.broadcast %17 : vector<2x1xf32> to vector<2x8xf32>
    %19 = arith.addf %16, %18 : vector<2x8xf32>
    %20 = tpu.iota {dimensions = array<i32: 0>} : vector<2x8xi32>
    %21 = arith.negf %19 : vector<2x8xf32>
    %22 = math.exp %21 : vector<2x8xf32>
    %cst_17 = arith.constant 1.000000e+00 : f32
    %23 = vector.broadcast %cst_17 : f32 to vector<2x8xf32>
    %24 = arith.addf %23, %22 : vector<2x8xf32>
    %25 = arith.divf %23, %24 : vector<2x8xf32>
    %cst_18 = arith.constant 2.200000e-01 : f32
    %26 = vector.broadcast %cst_18 : f32 to vector<2x8xf32>
    %27 = arith.mulf %25, %26 : vector<2x8xf32>
    %28 = math.tanh %19 : vector<2x8xf32>
    %cst_19 = arith.constant 2.000000e+00 : f32
    %29 = vector.broadcast %cst_19 : f32 to vector<2x8xf32>
    %30 = arith.mulf %28, %29 : vector<2x8xf32>
    %c0_i32 = arith.constant 0 : i32
    %31 = vector.broadcast %c0_i32 : i32 to vector<2x8xi32>
    %32 = arith.cmpi eq, %20, %31 : vector<2x8xi32>
    %c1_i32 = arith.constant 1 : i32
    %33 = vector.broadcast %c1_i32 : i32 to vector<2x8xi32>
    %34 = arith.cmpi eq, %20, %33 : vector<2x8xi32>
    %35 = arith.select %34, %30, %19 : vector<2x8xi1>, vector<2x8xf32>
    %36 = arith.select %32, %27, %35 : vector<2x8xi1>, vector<2x8xf32>
    %c0_20 = arith.constant 0 : index
    %c0_21 = arith.constant 0 : index
    %37 = vector.load %arg8[%c0_20, %c0_21] : memref<2x8xf32, #tpu.memory_space<vmem>>, vector<2x8xf32>
    tpu.vector_store %arg8[%c0_20, %c0_21], %36 {strides = array<i32>} : memref<2x8xf32, #tpu.memory_space<vmem>>, vector<2x8xf32>,
    return
  }
  func.func @transform_0(%arg0: i32) -> (i32, i32) {
    %c0_i32 = arith.constant 0 : i32
    %c0_i32_0 = arith.constant 0 : i32
    return %c0_i32, %arg0 : i32, i32
  }
  func.func @transform_1(%arg0: i32) -> (i32, i32) {
    %c0_i32 = arith.constant 0 : i32
    %c0_i32_0 = arith.constant 0 : i32
    %c0_i32_1 = arith.constant 0 : i32
    return %c0_i32, %c0_i32_0 : i32, i32
  }
  func.func @transform_2(%arg0: i32) -> (i32, i32) {
    %c0_i32 = arith.constant 0 : i32
    %c0_i32_0 = arith.constant 0 : i32
    %c0_i32_1 = arith.constant 0 : i32
    return %c0_i32, %c0_i32_0 : i32, i32
  }
  func.func @transform_3(%arg0: i32) -> (i32, i32) {
    %c0_i32 = arith.constant 0 : i32
    %c0_i32_0 = arith.constant 0 : i32
    %c0_i32_1 = arith.constant 0 : i32
    return %c0_i32, %c0_i32_0 : i32, i32
  }
  func.func @transform_4(%arg0: i32) -> (i32, i32) {
    %c0_i32 = arith.constant 0 : i32
    %c0_i32_0 = arith.constant 0 : i32
    %c0_i32_1 = arith.constant 0 : i32
    return %c0_i32, %c0_i32_0 : i32, i32
  }
  func.func @transform_5(%arg0: i32) -> (i32, i32) {
    %c0_i32 = arith.constant 0 : i32
    %c0_i32_0 = arith.constant 0 : i32
    %c0_i32_1 = arith.constant 0 : i32
    return %c0_i32, %c0_i32_0 : i32, i32
  }
  func.func @transform_6(%arg0: i32) -> (i32, i32) {
    %c0_i32 = arith.constant 0 : i32
    %c0_i32_0 = arith.constant 0 : i32
    %c0_i32_1 = arith.constant 0 : i32
    return %c0_i32, %c0_i32_0 : i32, i32
  }
  func.func @transform_7(%arg0: i32) -> (i32, i32) {
    %c0_i32 = arith.constant 0 : i32
    %c0_i32_0 = arith.constant 0 : i32
    return %c0_i32, %arg0 : i32, i32
  }
}

</mosaic_0001>

<llo_original>
// kernel: tpu_custom_call.1
$region0: #{tpu_custom_call.1}
  #allocation0 [shape = 'u32[]', space=smem, size = 0x4, offset = 0x4, fixed_abs, tag = 'smem constant byte address 0x4 - core index']
  #allocation1 [shape = 'u32[144,128]{1,0:T(1,128)}', space=vmem, size = 0x12000, scoped, tag = 'internal scratch']
  %s0 = inlined_call_operand.vmem [shape: f32[20,8], index: 0, kind: input, shape index: {}]
  %s1 = inlined_call_operand.vmem [shape: f32[32,20], index: 1, kind: input, shape index: {}]
  %s2 = inlined_call_operand.vmem [shape: f32[32,1], index: 2, kind: input, shape index: {}]
  %s3 = inlined_call_operand.vmem [shape: f32[32,32], index: 3, kind: input, shape index: {}]
  %s4 = inlined_call_operand.vmem [shape: f32[32,1], index: 4, kind: input, shape index: {}]
  %s5 = inlined_call_operand.vmem [shape: f32[2,32], index: 5, kind: input, shape index: {}]
  %s6 = inlined_call_operand.vmem [shape: f32[2,1], index: 6, kind: input, shape index: {}]
  %s7 = inlined_call_operand.hbm [shape: f32[2,8], index: 7, kind: output, shape index: {}]
  %s8 = sld [smem:[#allocation0]]
  $region38: #{tpu_custom_call.1} parent=0
    _
  %s10 = ssub.s32 1, %s8
  %s11 = scalar_select 0, %s10, %s8
  $region1: #{tpu_custom_call.1} parent=0
    #allocation2 [shape = 'u8[1024]{0}', space=vmem, size = 0x400, scoped, tag = 'output window, operand 0, single buffered']
    #allocation3 [shape = 's32[1]{0}', space=sflag, size = 0x4, scoped, tag = 'scoped memory for tpu_custom_call.1']
    %12 = vsyncpa [#allocation3], 0
    // Predicated region
    $region2: #{tpu_custom_call.1} parent=1 // pred_check
      _
    $region3: #{tpu_custom_call.1} parent=1 // pred_check_branch
      %14 = sbr.rel (0) target = $region5
    $region4: #{tpu_custom_call.1} parent=1 // pred_region
      _
    $region5: #{tpu_custom_call.1} parent=1 // pred_fallthru
      _
    // Predicated region
    $region6: #{tpu_custom_call.1} parent=1 // pred_check
      _
    $region7: #{tpu_custom_call.1} parent=1 // pred_check_branch
      %16 = sbr.rel (0) target = $region9
    $region8: #{tpu_custom_call.1} parent=1 // pred_region
      _
    $region9: #{tpu_custom_call.1} parent=1 // pred_fallthru
      _
    // Predicated region
    $region10: #{tpu_custom_call.1} parent=1 // pred_check
      _
    $region11: #{tpu_custom_call.1} parent=1 // pred_check_branch
      %18 = sbr.rel (0) target = $region13
    $region12: #{tpu_custom_call.1} parent=1 // pred_region
      _
    $region13: #{tpu_custom_call.1} parent=1 // pred_fallthru
      _
    // Predicated region
    $region14: #{tpu_custom_call.1} parent=1 // pred_check
      _
    $region15: #{tpu_custom_call.1} parent=1 // pred_check_branch
      %20 = sbr.rel (0) target = $region17
    $region16: #{tpu_custom_call.1} parent=1 // pred_region
      _
    $region17: #{tpu_custom_call.1} parent=1 // pred_fallthru
      _
    // Predicated region
    $region18: #{tpu_custom_call.1} parent=1 // pred_check
      _
    $region19: #{tpu_custom_call.1} parent=1 // pred_check_branch
      %22 = sbr.rel (0) target = $region21
    $region20: #{tpu_custom_call.1} parent=1 // pred_region
      _
    $region21: #{tpu_custom_call.1} parent=1 // pred_fallthru
      _
    // Predicated region
    $region22: #{tpu_custom_call.1} parent=1 // pred_check
      _
    $region23: #{tpu_custom_call.1} parent=1 // pred_check_branch
      %24 = sbr.rel (0) target = $region25
    $region24: #{tpu_custom_call.1} parent=1 // pred_region
      _
    $region25: #{tpu_custom_call.1} parent=1 // pred_fallthru
      _
    // Predicated region
    $region26: #{tpu_custom_call.1} parent=1 // pred_check
      _
    $region27: #{tpu_custom_call.1} parent=1 // pred_check_branch
      %26 = sbr.rel (0) target = $region29
    $region28: #{tpu_custom_call.1} parent=1 // pred_region
      _
    $region29: #{tpu_custom_call.1} parent=1 // pred_fallthru
      _
    %v27 = vld [vmem:[%s0] sm:$0xff]
    %v28 = vld [vmem:[%s0 + $0x8] sm:$0xff]
    %v29 = vld [vmem:[%s0 + $0x10] sm:$0xf]
    %v30 = vld [vmem:[%s1] sm:$0xff]
    %v31 = vld [vmem:[%s1 + $0x8] sm:$0xff]
    %v32 = vld [vmem:[%s1 + $0x10] sm:$0xff]
    %v33 = vld [vmem:[%s1 + $0x18] sm:$0xff]
    %v34 = vld [vmem:[%s2] sm:$0xff]
    %v35 = vld [vmem:[%s2 + $0x8] sm:$0xff]
    %v36 = vld [vmem:[%s2 + $0x10] sm:$0xff]
    %v37 = vld [vmem:[%s2 + $0x18] sm:$0xff]
    %39 = vset.pattern.permute.xlu0 0
    %40 = vperm.xlu0 %39, %v34
    %v41 = vpop.permute.xlu0 %40
    %44 = vset.pattern.permute.xlu0 0
    %45 = vperm.xlu0 %44, %v35
    %v46 = vpop.permute.xlu0 %45
    %49 = vset.pattern.permute.xlu0 0
    %50 = vperm.xlu0 %49, %v36
    %v51 = vpop.permute.xlu0 %50
    %54 = vset.pattern.permute.xlu0 0
    %55 = vperm.xlu0 %54, %v37
    %v56 = vpop.permute.xlu0 %55
    %vm58 = vcmask 162816
    %v60 = vsel %vm58, %v30, 0
    %v63 = vsel %vm58, %v31, 0
    %v66 = vsel %vm58, %v32, 0
    %v69 = vsel %vm58, %v33, 0
    %vm71 = vcmask 1043456
    %v73 = vsel %vm71, %v29, 0
    %75 = vmatprep.subr.mxu0 0.0
    %76 = vmatpush1.msra.mxu0 0.0
    %77 = vmatprep.subr.mxu0 0.0
    %78 = vmatpush1.msra.mxu0 0.0
    %79 = vmatprep.subr.mxu0 0.0
    %80 = vmatpush1.msra.mxu0 0.0
    %81 = vmatprep.subr.mxu0 0.0
    %82 = vmatpush1.msra.mxu0 0.0
    %83 = vmatprep.subr.mxu0 0.0
    %84 = vmatpush1.msra.mxu0 0.0
    %85 = vmatprep.subr.mxu0 0.0
    %86 = vmatpush1.msra.mxu0 0.0
    %87 = vmatprep.subr.mxu0 0.0
    %88 = vmatpush1.msra.mxu0 0.0
    %89 = vmatprep.subr.mxu0 0.0
    %90 = vmatpush1.msra.mxu0 0.0
    %91 = vmatprep.subr.mxu0 0.0
    %92 = vmatpush1.msra.mxu0 0.0
    %93 = vmatprep.subr.mxu0 0.0
    %94 = vmatpush1.msra.mxu0 0.0
    %95 = vmatprep.subr.mxu0 0.0
    %96 = vmatpush1.msra.mxu0 0.0
    %97 = vmatprep.subr.mxu0 0.0
    %98 = vmatpush1.msra.mxu0 0.0
    %99 = vmatprep.subr.mxu0 0.0
    %100 = vmatpush1.msra.mxu0 0.0
    %101 = vmatprep.subr.mxu0 0.0
    %102 = vmatpush1.msra.mxu0 %v73
    %103 = vmatprep.subr.mxu0 0.0
    %104 = vmatpush1.msra.mxu0 %v28
    %105 = vmatprep.subr.mxu0 0.0
    %106 = vmatpush1.msra.mxu0 %v27
    %107 = vmatprep.subr.mxu0 0.0
    %108 = vmatpush2.msra.mxu0 0.0
    %109 = vmatprep.subr.mxu0 0.0
    %110 = vmatpush2.msra.mxu0 0.0
    %111 = vmatprep.subr.mxu0 0.0
    %112 = vmatpush2.msra.mxu0 0.0
    %113 = vmatprep.subr.mxu0 0.0
    %114 = vmatpush2.msra.mxu0 0.0
    %115 = vmatprep.subr.mxu0 0.0
    %116 = vmatpush2.msra.mxu0 0.0
    %117 = vmatprep.subr.mxu0 0.0
    %118 = vmatpush2.msra.mxu0 0.0
    %119 = vmatprep.subr.mxu0 0.0
    %120 = vmatpush2.msra.mxu0 0.0
    %121 = vmatprep.subr.mxu0 0.0
    %122 = vmatpush2.msra.mxu0 0.0
    %123 = vmatprep.subr.mxu0 0.0
    %124 = vmatpush2.msra.mxu0 0.0
    %125 = vmatprep.subr.mxu0 0.0
    %126 = vmatpush2.msra.mxu0 0.0
    %127 = vmatprep.subr.mxu0 0.0
    %128 = vmatpush2.msra.mxu0 0.0
    %129 = vmatprep.subr.mxu0 0.0
    %130 = vmatpush2.msra.mxu0 0.0
    %131 = vmatprep.subr.mxu0 0.0
    %132 = vmatpush2.msra.mxu0 0.0
    %133 = vmatprep.subr.mxu0 0.0
    %134 = vmatpush2.msra.mxu0 0.0
    %135 = vmatprep.subr.mxu0 0.0
    %136 = vmatpush2.msra.mxu0 0.0
    %137 = vmatprep.subr.mxu0 0.0
    %138 = vmatpush2.msra.mxu0 0.0
    %139 = vmatprep.mubr.f32.mxu0 0.0
    %140 = vmatmul.mubr.f32.gmra.mxu0 %v60
    %v141 = vpop.f32.mrf.mxu0
    %v142 = vadd.f32 %v41, %v141
    %v143 = vpop.f32.mrf.mxu0
    %144 = vmatprep.mubr.f32.mxu0 0.0
    %145 = vmatmul.mubr.f32.gmra.mxu0 %v63
    %v146 = vpop.f32.mrf.mxu0
    %v147 = vadd.f32 %v46, %v146
    %v148 = vpop.f32.mrf.mxu0
    %149 = vmatprep.mubr.f32.mxu0 0.0
    %150 = vmatmul.mubr.f32.gmra.mxu0 %v66
    %v151 = vpop.f32.mrf.mxu0
    %v152 = vadd.f32 %v51, %v151
    %v153 = vpop.f32.mrf.mxu0
    %154 = vmatprep.mubr.f32.mxu0 0.0
    %155 = vmatmul.mubr.f32.gmra.mxu0 %v69
    %v156 = vpop.f32.mrf.mxu0
    %v157 = vadd.f32 %v56, %v156
    %v158 = vpop.f32.mrf.mxu0
    %159 = vdwg.mxu0
    %v160 = vmax.f32 %v142, 0.0
    %v161 = vmax.f32 %v147, 0.0
    %v162 = vmax.f32 %v152, 0.0
    %v163 = vmax.f32 %v157, 0.0
    %v164 = vld [vmem:[%s3] sm:$0xff]
    %v165 = vld [vmem:[%s3 + $0x8] sm:$0xff]
    %v166 = vld [vmem:[%s3 + $0x10] sm:$0xff]
    %v167 = vld [vmem:[%s3 + $0x18] sm:$0xff]
    %v168 = vld [vmem:[%s4] sm:$0xff]
    %v169 = vld [vmem:[%s4 + $0x8] sm:$0xff]
    %v170 = vld [vmem:[%s4 + $0x10] sm:$0xff]
    %v171 = vld [vmem:[%s4 + $0x18] sm:$0xff]
    %173 = vset.pattern.permute.xlu0 0
    %174 = vperm.xlu0 %173, %v168
    %v175 = vpop.permute.xlu0 %174
    %178 = vset.pattern.permute.xlu0 0
    %179 = vperm.xlu0 %178, %v169
    %v180 = vpop.permute.xlu0 %179
    %183 = vset.pattern.permute.xlu0 0
    %184 = vperm.xlu0 %183, %v170
    %v185 = vpop.permute.xlu0 %184
    %188 = vset.pattern.permute.xlu0 0
    %189 = vperm.xlu0 %188, %v171
    %v190 = vpop.permute.xlu0 %189
    %vm192 = vcmask 261120
    %v194 = vsel %vm192, %v164, 0
    %v197 = vsel %vm192, %v165, 0
    %v200 = vsel %vm192, %v166, 0
    %v203 = vsel %vm192, %v167, 0
    %205 = vmatprep.subr.mxu0 0.0
    %206 = vmatpush1.msra.mxu0 0.0
    %207 = vmatprep.subr.mxu0 0.0
    %208 = vmatpush1.msra.mxu0 0.0
    %209 = vmatprep.subr.mxu0 0.0
    %210 = vmatpush1.msra.mxu0 0.0
    %211 = vmatprep.subr.mxu0 0.0
    %212 = vmatpush1.msra.mxu0 0.0
    %213 = vmatprep.subr.mxu0 0.0
    %214 = vmatpush1.msra.mxu0 0.0
    %215 = vmatprep.subr.mxu0 0.0
    %216 = vmatpush1.msra.mxu0 0.0
    %217 = vmatprep.subr.mxu0 0.0
    %218 = vmatpush1.msra.mxu0 0.0
    %219 = vmatprep.subr.mxu0 0.0
    %220 = vmatpush1.msra.mxu0 0.0
    %221 = vmatprep.subr.mxu0 0.0
    %222 = vmatpush1.msra.mxu0 0.0
    %223 = vmatprep.subr.mxu0 0.0
    %224 = vmatpush1.msra.mxu0 0.0
    %225 = vmatprep.subr.mxu0 0.0
    %226 = vmatpush1.msra.mxu0 0.0
    %227 = vmatprep.subr.mxu0 0.0
    %228 = vmatpush1.msra.mxu0 0.0
    %229 = vmatprep.subr.mxu0 0.0
    %230 = vmatpush1.msra.mxu0 %v163
    %231 = vmatprep.subr.mxu0 0.0
    %232 = vmatpush1.msra.mxu0 %v162
    %233 = vmatprep.subr.mxu0 0.0
    %234 = vmatpush1.msra.mxu0 %v161
    %235 = vmatprep.subr.mxu0 0.0
    %236 = vmatpush1.msra.mxu0 %v160
    %237 = vmatprep.subr.mxu0 0.0
    %238 = vmatpush2.msra.mxu0 0.0
    %239 = vmatprep.subr.mxu0 0.0
    %240 = vmatpush2.msra.mxu0 0.0
    %241 = vmatprep.subr.mxu0 0.0
    %242 = vmatpush2.msra.mxu0 0.0
    %243 = vmatprep.subr.mxu0 0.0
    %244 = vmatpush2.msra.mxu0 0.0
    %245 = vmatprep.subr.mxu0 0.0
    %246 = vmatpush2.msra.mxu0 0.0
    %247 = vmatprep.subr.mxu0 0.0
    %248 = vmatpush2.msra.mxu0 0.0
    %249 = vmatprep.subr.mxu0 0.0
    %250 = vmatpush2.msra.mxu0 0.0
    %251 = vmatprep.subr.mxu0 0.0
    %252 = vmatpush2.msra.mxu0 0.0
    %253 = vmatprep.subr.mxu0 0.0
    %254 = vmatpush2.msra.mxu0 0.0
    %255 = vmatprep.subr.mxu0 0.0
    %256 = vmatpush2.msra.mxu0 0.0
    %257 = vmatprep.subr.mxu0 0.0
    %258 = vmatpush2.msra.mxu0 0.0
    %259 = vmatprep.subr.mxu0 0.0
    %260 = vmatpush2.msra.mxu0 0.0
    %261 = vmatprep.subr.mxu0 0.0
    %262 = vmatpush2.msra.mxu0 0.0
    %263 = vmatprep.subr.mxu0 0.0
    %264 = vmatpush2.msra.mxu0 0.0
    %265 = vmatprep.subr.mxu0 0.0
    %266 = vmatpush2.msra.mxu0 0.0
    %267 = vmatprep.subr.mxu0 0.0
    %268 = vmatpush2.msra.mxu0 0.0
    %269 = vmatprep.mubr.f32.mxu0 0.0
    %270 = vmatmul.mubr.f32.gmra.mxu0 %v194
    %v271 = vpop.f32.mrf.mxu0
    %v272 = vadd.f32 %v175, %v271
    %v273 = vpop.f32.mrf.mxu0
    %274 = vmatprep.mubr.f32.mxu0 0.0
    %275 = vmatmul.mubr.f32.gmra.mxu0 %v197
    %v276 = vpop.f32.mrf.mxu0
    %v277 = vadd.f32 %v180, %v276
    %v278 = vpop.f32.mrf.mxu0
    %279 = vmatprep.mubr.f32.mxu0 0.0
    %280 = vmatmul.mubr.f32.gmra.mxu0 %v200
    %v281 = vpop.f32.mrf.mxu0
    %v282 = vadd.f32 %v185, %v281
    %v283 = vpop.f32.mrf.mxu0
    %284 = vmatprep.mubr.f32.mxu0 0.0
    %285 = vmatmul.mubr.f32.gmra.mxu0 %v203
    %v286 = vpop.f32.mrf.mxu0
    %v287 = vadd.f32 %v190, %v286
    %v288 = vpop.f32.mrf.mxu0
    %289 = vdwg.mxu0
    %v290 = vmax.f32 %v272, 0.0
    %v291 = vmax.f32 %v277, 0.0
    %v292 = vmax.f32 %v282, 0.0
    %v293 = vmax.f32 %v287, 0.0
    %v294 = vld [vmem:[%s5] sm:$0x3]
    %v295 = vld [vmem:[%s6] sm:$0x3]
    %297 = vset.pattern.permute.xlu0 0
    %298 = vperm.xlu0 %297, %v295
    %v299 = vpop.permute.xlu0 %298
    %v302 = vsel %vm192, %v294, 0
    %304 = vmatprep.subr.mxu0 0.0
    %305 = vmatpush1.msra.mxu0 0.0
    %306 = vmatprep.subr.mxu0 0.0
    %307 = vmatpush1.msra.mxu0 0.0
    %308 = vmatprep.subr.mxu0 0.0
    %309 = vmatpush1.msra.mxu0 0.0
    %310 = vmatprep.subr.mxu0 0.0
    %311 = vmatpush1.msra.mxu0 0.0
    %312 = vmatprep.subr.mxu0 0.0
    %313 = vmatpush1.msra.mxu0 0.0
    %314 = vmatprep.subr.mxu0 0.0
    %315 = vmatpush1.msra.mxu0 0.0
    %316 = vmatprep.subr.mxu0 0.0
    %317 = vmatpush1.msra.mxu0 0.0
    %318 = vmatprep.subr.mxu0 0.0
    %319 = vmatpush1.msra.mxu0 0.0
    %320 = vmatprep.subr.mxu0 0.0
    %321 = vmatpush1.msra.mxu0 0.0
    %322 = vmatprep.subr.mxu0 0.0
    %323 = vmatpush1.msra.mxu0 0.0
    %324 = vmatprep.subr.mxu0 0.0
    %325 = vmatpush1.msra.mxu0 0.0
    %326 = vmatprep.subr.mxu0 0.0
    %327 = vmatpush1.msra.mxu0 0.0
    %328 = vmatprep.subr.mxu0 0.0
    %329 = vmatpush1.msra.mxu0 %v293
    %330 = vmatprep.subr.mxu0 0.0
    %331 = vmatpush1.msra.mxu0 %v292
    %332 = vmatprep.subr.mxu0 0.0
    %333 = vmatpush1.msra.mxu0 %v291
    %334 = vmatprep.subr.mxu0 0.0
    %335 = vmatpush1.msra.mxu0 %v290
    %336 = vmatprep.subr.mxu0 0.0
    %337 = vmatpush2.msra.mxu0 0.0
    %338 = vmatprep.subr.mxu0 0.0
    %339 = vmatpush2.msra.mxu0 0.0
    %340 = vmatprep.subr.mxu0 0.0
    %341 = vmatpush2.msra.mxu0 0.0
    %342 = vmatprep.subr.mxu0 0.0
    %343 = vmatpush2.msra.mxu0 0.0
    %344 = vmatprep.subr.mxu0 0.0
    %345 = vmatpush2.msra.mxu0 0.0
    %346 = vmatprep.subr.mxu0 0.0
    %347 = vmatpush2.msra.mxu0 0.0
    %348 = vmatprep.subr.mxu0 0.0
    %349 = vmatpush2.msra.mxu0 0.0
    %350 = vmatprep.subr.mxu0 0.0
    %351 = vmatpush2.msra.mxu0 0.0
    %352 = vmatprep.subr.mxu0 0.0
    %353 = vmatpush2.msra.mxu0 0.0
    %354 = vmatprep.subr.mxu0 0.0
    %355 = vmatpush2.msra.mxu0 0.0
    %356 = vmatprep.subr.mxu0 0.0
    %357 = vmatpush2.msra.mxu0 0.0
    %358 = vmatprep.subr.mxu0 0.0
    %359 = vmatpush2.msra.mxu0 0.0
    %360 = vmatprep.subr.mxu0 0.0
    %361 = vmatpush2.msra.mxu0 0.0
    %362 = vmatprep.subr.mxu0 0.0
    %363 = vmatpush2.msra.mxu0 0.0
    %364 = vmatprep.subr.mxu0 0.0
    %365 = vmatpush2.msra.mxu0 0.0
    %366 = vmatprep.subr.mxu0 0.0
    %367 = vmatpush2.msra.mxu0 0.0
    %368 = vmatprep.mubr.f32.mxu0 0.0
    %369 = vmatmul.mubr.f32.gmra.mxu0 %v302
    %v370 = vpop.f32.mrf.mxu0
    %v371 = vadd.f32 %v299, %v370
    %v372 = vpop.f32.mrf.mxu0
    %373 = vdwg.mxu0
    %v374 = vlaneseq
    %v375 = vshrl.u32 %v374, 7
    %v376 = vxor.u32 %v371, 2147483648
    %v377 = vmul.f32 %v376, 1.442695
    %v378 = vpow.pop %v377
    %v379 = vadd.f32 %v378, 1.0
    %v380 = vrcp.pop %v379
    %v381 = vmul.f32 1.0, %v380
    %v382 = vmul.f32 %v381, 0.22
    %v383 = vtanh.pop %v371
    %v384 = vmul.f32 %v383, 2.0
    %vm385 = vcmp.eq.s32.totalorder %v375, 0
    %vm386 = vcmp.eq.s32.totalorder %v375, 1
    %v387 = vsel %vm386, %v384, %v371
    %v388 = vsel %vm385, %v382, %v387
    %vm389 = vcmask 58368
    %390 = vst.msk [vmem:[#allocation2] sm:$0x3] %vm389, %v388
    // Predicated region
    $region30: #{tpu_custom_call.1} parent=1 // pred_check
      _
    $region31: #{tpu_custom_call.1} parent=1 // pred_check_branch
      %392 = sbr.rel (0) target = $region33
    $region32: #{tpu_custom_call.1} parent=1 // pred_region
      %s394 = ssub.s32 32, 32
      %395 = vsyncadd [#allocation3], %s394
      %s397 = sshll.u32 [#allocation2], 4
      %s398 = int_to_ptr.vmem [resolvable:$true] %s397
      %400 = dma.vmem_to_hbm [thread:$0]  %s398, 32, %s7, [#allocation3]
    $region33: #{tpu_custom_call.1} parent=1 // pred_fallthru
      _
    // Predicated region
    $region34: #{tpu_custom_call.1} parent=1 // pred_check
      _
    $region35: #{tpu_custom_call.1} parent=1 // pred_check_branch
      %402 = sbr.rel (0) target = $region37
    $region36: #{tpu_custom_call.1} parent=1 // pred_region
      %403 = dma.done [#allocation3], 32
    $region37: #{tpu_custom_call.1} parent=1 // pred_fallthru
      _
    %404 = vsyncpa [#allocation3], 1

</llo_original>
